<compile_context>
chip_gen: v5e
topology: v5e:2x2
jax: 0.10.0
libtpu: 0.0.40
codegen_flags: <defaults>
</compile_context>

<pallas_src>
import functools

import jax
import jax.numpy as jnp
from jax.experimental import pallas as pl
from jax.experimental.pallas import tpu as pltpu


def _round_up(x: int, m: int) -> int:
    return ((x + m - 1) // m) * m


def _residual_kernel(*refs, eps: float, rate: float, features: int,
                     d_pad: int, tn: int, n_col: int):
    """One (row-tile, col-tile) step of  out = x + dropout(LN(x) @ W_t + b)."""
    if rate > 0.0:
        x_ref, wt_ref, b_ref, g_ref, beta_ref, bits_ref, o_ref, normed_ref = refs
    else:
        x_ref, wt_ref, b_ref, g_ref, beta_ref, o_ref, normed_ref = refs
        bits_ref = None

    j = pl.program_id(1)

    # ---- LayerNorm once per row tile, cached in VMEM scratch ----
    @pl.when(j == 0)
    def _():
        x = x_ref[...].astype(jnp.float32)                       # (tm, d_pad)
        if features != d_pad:
            col = jax.lax.broadcasted_iota(jnp.int32, x.shape, 1)
            mask = col < features
            x = jnp.where(mask, x, 0.0)
        mean = jnp.sum(x, axis=-1, keepdims=True) * (1.0 / features)
        diff = x - mean
        if features != d_pad:
            diff = jnp.where(mask, diff, 0.0)
        var = jnp.sum(diff * diff, axis=-1, keepdims=True) * (
            1.0 / max(features - 1, 1))                          # unbiased (ddof=1)
        inv = 1.0 / (jnp.sqrt(var) + eps)                        # per-row reciprocal
        normed = (g_ref[...].astype(jnp.float32) * (diff * inv)
                  + beta_ref[...].astype(jnp.float32))
        normed_ref[...] = normed.astype(normed_ref.dtype)

    # ---- Sublayer (affine) on the MXU, f32 accumulation ----
    y = jnp.dot(normed_ref[...], wt_ref[...],
                preferred_element_type=jnp.float32)              # (tm, tn)
    y = y + b_ref[...].astype(jnp.float32)

    # ---- Dropout (inverted scaling), only if enabled at trace time ----
    if rate > 0.0:
        keep_prob = 1.0 - rate
        threshold = jnp.uint32(min(int(keep_prob * 4294967296.0), 4294967295))
        keep = bits_ref[...] < threshold
        y = jnp.where(keep, y * (1.0 / keep_prob), 0.0)

    # ---- Residual add (re-read the resident x tile; no long-lived f32 copy) ----
    if n_col == 1:
        xj = x_ref[...].astype(jnp.float32)
    else:
        start = pl.multiple_of(j * tn, tn)
        xj = x_ref[:, pl.ds(start, tn)].astype(jnp.float32)
    o_ref[...] = (xj + y).astype(o_ref.dtype)


@functools.partial(
    jax.jit, static_argnames=("eps", "dropout_rate", "deterministic", "tm"))
def residual_connection(x, gamma, beta, w_t, b, seed=0, *,
                        eps=1e-6, dropout_rate=0.0, deterministic=True,
                        tm=512):
    """Fused ResidualConnection forward (sublayer = Linear(d, d)).

    x     : (batch, seq, d)
    gamma : (d,)   LayerNorm scale       beta : (d,)  LayerNorm shift
    w_t   : (d, d) Linear weight transposed (PyTorch weight.T).  May be bf16
            for a 2-4x MXU throughput / half-weight-VMEM path.
    b     : (d,)   Linear bias
    returns (batch, seq, d)
    """
    batch, seq, d = x.shape
    assert w_t.shape == (d, d) and b.shape == (d,)
    assert gamma.shape == (d,) and beta.shape == (d,)

    rate = 0.0 if deterministic else float(dropout_rate)

    M = batch * seq
    d_pad = _round_up(d, 128)                 # lane-dense, unmasked stores
    x2d = x.reshape(M, d)

    # ---- Row tile: big (amortize per-step overhead), but give both v7x
    # TensorCores work, and re-balance so padded rows are minimal. ----
    tm_eff = min(tm, _round_up(M, 16))
    if tm_eff >= M and M > 256:               # force >= 2 row tiles when large
        tm_eff = _round_up(-(-M // 2), 16)
    n_row = -(-M // tm_eff)
    tm_eff = _round_up(-(-M // n_row), 16)    # minimize wasted padded rows
    Mp = n_row * tm_eff

    # ---- Column tile: whole width when it fits; otherwise a 128-multiple
    # divisor (keeps the weight tile resident per j, lane-dense stores). ----
    if d_pad <= 2048:
        tn = d_pad
    else:
        tn = next(c for c in (1024, 512, 256, 128) if d_pad % c == 0)
    n_col = d_pad // tn

    # ---- Padding (zero rows/cols are LN-safe and sliced off afterwards) ----
    if Mp != M or d_pad != d:
        x2d = jnp.pad(x2d, ((0, Mp - M), (0, d_pad - d)))
    if d_pad != d:
        gamma_p = jnp.pad(gamma, (0, d_pad - d))
        beta_p = jnp.pad(beta, (0, d_pad - d))
        b_p = jnp.pad(b, (0, d_pad - d))
        w_t_p = jnp.pad(w_t, ((0, d_pad - d), (0, d_pad - d)))
    else:
        gamma_p, beta_p, b_p, w_t_p = gamma, beta, b, w_t

    gamma2d = gamma_p.reshape(1, d_pad)
    beta2d = beta_p.reshape(1, d_pad)
    b2d = b_p.reshape(1, d_pad)

    kernel = functools.partial(_residual_kernel, eps=float(eps), rate=rate,
                               features=d, d_pad=d_pad, tn=tn, n_col=n_col)

    # ---- Block specs.  Grid-constant operands are single-buffered. ----
    in_specs = [
        pl.BlockSpec((tm_eff, d_pad), lambda i, j: (i, 0)),          # x rows
        (pl.BlockSpec((d_pad, tn), lambda i, j: (0, j),
                      pipeline_mode=pl.Buffered(1))
         if n_col == 1 else
         pl.BlockSpec((d_pad, tn), lambda i, j: (0, j))),            # weight
        (pl.BlockSpec((1, tn), lambda i, j: (0, j),
                      pipeline_mode=pl.Buffered(1))
         if n_col == 1 else
         pl.BlockSpec((1, tn), lambda i, j: (0, j))),                # bias
        pl.BlockSpec((1, d_pad), lambda i, j: (0, 0),
                     pipeline_mode=pl.Buffered(1)),                  # gamma
        pl.BlockSpec((1, d_pad), lambda i, j: (0, 0),
                     pipeline_mode=pl.Buffered(1)),                  # beta
    ]
    args = [x2d, w_t_p, b2d, gamma2d, beta2d]

    if rate > 0.0:
        key = jax.random.PRNGKey(seed)
        bits = jax.random.bits(key, (Mp, d_pad), dtype=jnp.uint32)
        in_specs.append(pl.BlockSpec((tm_eff, tn), lambda i, j: (i, j)))
        args.append(bits)

    # ---- VMEM budget derived from the actual footprint (v7x-safe cap) ----
    elt_x = jnp.dtype(x.dtype).itemsize
    elt_w = jnp.dtype(w_t.dtype).itemsize
    footprint = (2 * tm_eff * d_pad * elt_x            # x double buffer
                 + 2 * tm_eff * tn * elt_x             # out double buffer
                 + (1 if n_col == 1 else 2) * d_pad * tn * elt_w   # weight
                 + tm_eff * d_pad * elt_w              # normed scratch
                 + 8 * d_pad * elt_w                   # gamma/beta/bias
                 + (2 * tm_eff * tn * 4 if rate > 0.0 else 0)      # dropout bits
                 + 4 * tm_eff * max(d_pad, tn) * 4)    # f32 intermediates headroom
    vmem_limit = int(min(max(footprint + (4 << 20), 16 << 20), 48 << 20))

    weight_bytes = d_pad * d_pad * elt_w * (1 if n_col == 1 else n_row)
    cost = pl.CostEstimate(
        flops=2 * Mp * d_pad * d_pad + 10 * Mp * d_pad,
        transcendentals=Mp,                            # one sqrt per row
        bytes_accessed=(2 * Mp * d_pad) * elt_x + weight_bytes
        + (Mp * d_pad * 4 if rate > 0.0 else 0),
    )

    out2d = pl.pallas_call(
        kernel,
        out_shape=jax.ShapeDtypeStruct((Mp, d_pad), x.dtype),
        grid=(n_row, n_col),
        in_specs=in_specs,
        out_specs=pl.BlockSpec((tm_eff, tn), lambda i, j: (i, j)),
        scratch_shapes=[pltpu.VMEM((tm_eff, d_pad), w_t.dtype)],     # cached LN(x)
        compiler_params=pltpu.CompilerParams(
            dimension_semantics=("parallel", "arbitrary"),
            vmem_limit_bytes=vmem_limit,
        ),
        cost_estimate=cost,
    )(*args)

    if Mp != M or d_pad != d:
        out2d = out2d[:M, :d]
    return out2d.reshape(batch, seq, d)


def _reference(x, gamma, beta, w_t, b, eps=1e-6):
    """Pure-JAX reference of the PyTorch module (dropout disabled / eval)."""
    mean = jnp.mean(x, axis=-1, keepdims=True)
    std = jnp.std(x, axis=-1, keepdims=True, ddof=1)     # torch.std default: unbiased
    normed = gamma * (x - mean) / (std + eps) + beta
    sub = jnp.einsum("bsd,de->bse", normed, w_t,
                     precision=jax.lax.Precision.HIGHEST) + b
    return x + sub


if __name__ == "__main__":
    # Small shapes consistent with the module's forward.
    batch, seq, d_model = 2, 8, 512
    dropout_p = 0.1

    key = jax.random.PRNGKey(0)
    kx, kg, kb, kw, kbias = jax.random.split(key, 5)

    x = jax.random.normal(kx, (batch, seq, d_model), jnp.float32)

    # LayerNorm params (perturbed from the ones/zeros init so they matter).
    gamma = 1.0 + 0.1 * jax.random.normal(kg, (d_model,), jnp.float32)
    beta = 0.1 * jax.random.normal(kb, (d_model,), jnp.float32)

    # Linear(d_model, d_model) sublayer params, PyTorch-style init.
    bound = 1.0 / (d_model ** 0.5)
    weight = jax.random.uniform(kw, (d_model, d_model), jnp.float32,
                                minval=-bound, maxval=bound)   # (out, in) as in PyTorch
    bias = jax.random.uniform(kbias, (d_model,), jnp.float32,
                              minval=-bound, maxval=bound)
    weight_t = weight.T                                        # (in, out) for row-major matmul

    # Deterministic path (dropout off, as in eval) — check vs pure-JAX reference.
    y = residual_connection(x, gamma, beta, weight_t, bias,
                            dropout_rate=dropout_p, deterministic=True)
    y = jax.block_until_ready(y)

    y_ref = _reference(x, gamma, beta, weight_t, bias)
    assert y.shape == (batch, seq, d_model)
    max_err = float(jnp.max(jnp.abs(y - y_ref)))
    assert max_err < 1e-2, f"max abs error {max_err}"

    # Training path (dropout on) — exercise the fused mask/scale path once.
    y_drop = residual_connection(x, gamma, beta, weight_t, bias, seed=123,
                                 dropout_rate=dropout_p, deterministic=False)
    y_drop = jax.block_until_ready(y_drop)
    assert y_drop.shape == (batch, seq, d_model)
    assert bool(jnp.all(jnp.isfinite(y_drop)))

    print("KERNEL_OK")
</pallas_src>

<mosaic_0001>
module attributes {stable_mosaic.version = 11 : i64} {
  func.func @_residual_kernel(%arg0: i32, %arg1: i32, %arg2: memref<16x512xf32, #tpu.memory_space<vmem>>, %arg3: memref<512x512xf32, #tpu.memory_space<vmem>>, %arg4: memref<1x512xf32, #tpu.memory_space<vmem>>, %arg5: memref<1x512xf32, #tpu.memory_space<vmem>>, %arg6: memref<1x512xf32, #tpu.memory_space<vmem>>, %arg7: memref<16x512xf32, #tpu.memory_space<vmem>>, %arg8: memref<16x512xf32, #tpu.memory_space<vmem>>) attributes {dimension_semantics = [#tpu.dimension_semantics<parallel>, #tpu.dimension_semantics<arbitrary>], iteration_bounds = array<i64: 1, 1>, scalar_prefetch = 0 : i64, scratch_operands = 1 : i64, tpu.core_type = #tpu.core_type<tc>, window_params = [{transform_indices = @transform_0, window_bounds = array<i64: 16, 512>}, {pipeline_mode = #tpu.pipeline_mode<synchronous>, transform_indices = @transform_1, window_bounds = array<i64: 512, 512>}, {pipeline_mode = #tpu.pipeline_mode<synchronous>, transform_indices = @transform_2, window_bounds = array<i64: 1, 512>}, {pipeline_mode = #tpu.pipeline_mode<synchronous>, transform_indices = @transform_3, window_bounds = array<i64: 1, 512>}, {pipeline_mode = #tpu.pipeline_mode<synchronous>, transform_indices = @transform_4, window_bounds = array<i64: 1, 512>}, {transform_indices = @transform_5, window_bounds = array<i64: 16, 512>}]} {
    %c0_i32 = arith.constant 0 : i32
    %0 = arith.cmpi eq, %arg1, %c0_i32 : i32
    %1 = arith.extui %0 : i1 to i32
    %c0_i32_0 = arith.constant 0 : i32
    %2 = arith.cmpi ne, %1, %c0_i32_0 : i32
    scf.if %2 {
      %c0_10 = arith.constant 0 : index
      %c0_11 = arith.constant 0 : index
      %12 = vector.load %arg2[%c0_10, %c0_11] : memref<16x512xf32, #tpu.memory_space<vmem>>, vector<16x512xf32>
      %cst_12 = arith.constant dense<0.000000e+00> : vector<16xf32>
      %13 = vector.multi_reduction <add>, %12, %cst_12 [1] : vector<16x512xf32> to vector<16xf32>
      %14 = vector.shape_cast %13 : vector<16xf32> to vector<16x1xf32>
      %cst_13 = arith.constant 0.001953125 : f32
      %15 = vector.broadcast %cst_13 : f32 to vector<16x1xf32>
      %16 = arith.mulf %14, %15 : vector<16x1xf32>
      %17 = vector.broadcast %16 : vector<16x1xf32> to vector<16x512xf32>
      %18 = arith.subf %12, %17 : vector<16x512xf32>
      %19 = arith.mulf %18, %18 : vector<16x512xf32>
      %cst_14 = arith.constant dense<0.000000e+00> : vector<16xf32>
      %20 = vector.multi_reduction <add>, %19, %cst_14 [1] : vector<16x512xf32> to vector<16xf32>
      %21 = vector.shape_cast %20 : vector<16xf32> to vector<16x1xf32>
      %cst_15 = arith.constant 0.00195694715 : f32
      %22 = vector.broadcast %cst_15 : f32 to vector<16x1xf32>
      %23 = arith.mulf %21, %22 : vector<16x1xf32>
      %24 = math.sqrt %23 : vector<16x1xf32>
      %cst_16 = arith.constant 9.99999997E-7 : f32
      %25 = vector.broadcast %cst_16 : f32 to vector<16x1xf32>
      %26 = arith.addf %24, %25 : vector<16x1xf32>
      %cst_17 = arith.constant 1.000000e+00 : f32
      %27 = vector.broadcast %cst_17 : f32 to vector<16x1xf32>
      %28 = arith.divf %27, %26 : vector<16x1xf32>
      %c0_18 = arith.constant 0 : index
      %c0_19 = arith.constant 0 : index
      %29 = vector.load %arg5[%c0_18, %c0_19] : memref<1x512xf32, #tpu.memory_space<vmem>>, vector<1x512xf32>
      %30 = vector.broadcast %28 : vector<16x1xf32> to vector<16x512xf32>
      %31 = arith.mulf %18, %30 : vector<16x512xf32>
      %32 = vector.broadcast %29 : vector<1x512xf32> to vector<16x512xf32>
      %33 = arith.mulf %32, %31 : vector<16x512xf32>
      %c0_20 = arith.constant 0 : index
      %c0_21 = arith.constant 0 : index
      %34 = vector.load %arg6[%c0_20, %c0_21] : memref<1x512xf32, #tpu.memory_space<vmem>>, vector<1x512xf32>
      %35 = vector.broadcast %34 : vector<1x512xf32> to vector<16x512xf32>
      %36 = arith.addf %33, %35 : vector<16x512xf32>
      %c0_22 = arith.constant 0 : index
      %c0_23 = arith.constant 0 : index
      %37 = vector.load %arg8[%c0_22, %c0_23] : memref<16x512xf32, #tpu.memory_space<vmem>>, vector<16x512xf32>
      tpu.vector_store %arg8[%c0_22, %c0_23], %36 {strides = array<i32>} : memref<16x512xf32, #tpu.memory_space<vmem>>, vector<16x512xf32>,
    } else {
    }
    %c0 = arith.constant 0 : index
    %c0_1 = arith.constant 0 : index
    %3 = vector.load %arg8[%c0, %c0_1] : memref<16x512xf32, #tpu.memory_space<vmem>>, vector<16x512xf32>
    %c0_2 = arith.constant 0 : index
    %c0_3 = arith.constant 0 : index
    %4 = vector.load %arg3[%c0_2, %c0_3] : memref<512x512xf32, #tpu.memory_space<vmem>>, vector<512x512xf32>
    %cst = arith.constant dense<0.000000e+00> : vector<16x512xf32>
    %5 = tpu.matmul %3, %4, %cst {dimension_numbers = #tpu.dot_dimension_numbers<[1], [0], [0], [1], [0, 0, 1, 1], [], []>} : vector<16x512xf32>, vector<512x512xf32>, vector<16x512xf32> -> vector<16x512xf32>
    %c0_4 = arith.constant 0 : index
    %c0_5 = arith.constant 0 : index
    %6 = vector.load %arg4[%c0_4, %c0_5] : memref<1x512xf32, #tpu.memory_space<vmem>>, vector<1x512xf32>
    %7 = vector.broadcast %6 : vector<1x512xf32> to vector<16x512xf32>
    %8 = arith.addf %5, %7 : vector<16x512xf32>
    %c0_6 = arith.constant 0 : index
    %c0_7 = arith.constant 0 : index
    %9 = vector.load %arg2[%c0_6, %c0_7] : memref<16x512xf32, #tpu.memory_space<vmem>>, vector<16x512xf32>
    %10 = arith.addf %9, %8 : vector<16x512xf32>
    %c0_8 = arith.constant 0 : index
    %c0_9 = arith.constant 0 : index
    %11 = vector.load %arg7[%c0_8, %c0_9] : memref<16x512xf32, #tpu.memory_space<vmem>>, vector<16x512xf32>
    tpu.vector_store %arg7[%c0_8, %c0_9], %10 {strides = array<i32>} : memref<16x512xf32, #tpu.memory_space<vmem>>, vector<16x512xf32>,
    return
  }
  func.func @transform_0(%arg0: i32, %arg1: i32) -> (i32, i32) {
    %c0_i32 = arith.constant 0 : i32
    %c0_i32_0 = arith.constant 0 : i32
    return %arg0, %c0_i32 : i32, i32
  }
  func.func @transform_1(%arg0: i32, %arg1: i32) -> (i32, i32) {
    %c0_i32 = arith.constant 0 : i32
    %c0_i32_0 = arith.constant 0 : i32
    return %c0_i32, %arg1 : i32, i32
  }
  func.func @transform_2(%arg0: i32, %arg1: i32) -> (i32, i32) {
    %c0_i32 = arith.constant 0 : i32
    %c0_i32_0 = arith.constant 0 : i32
    return %c0_i32, %arg1 : i32, i32
  }
  func.func @transform_3(%arg0: i32, %arg1: i32) -> (i32, i32) {
    %c0_i32 = arith.constant 0 : i32
    %c0_i32_0 = arith.constant 0 : i32
    %c0_i32_1 = arith.constant 0 : i32
    return %c0_i32, %c0_i32_0 : i32, i32
  }
  func.func @transform_4(%arg0: i32, %arg1: i32) -> (i32, i32) {
    %c0_i32 = arith.constant 0 : i32
    %c0_i32_0 = arith.constant 0 : i32
    %c0_i32_1 = arith.constant 0 : i32
    return %c0_i32, %c0_i32_0 : i32, i32
  }
  func.func @transform_5(%arg0: i32, %arg1: i32) -> (i32, i32) {
    %c0_i32 = arith.constant 0 : i32
    return %arg0, %arg1 : i32, i32
  }
}

</mosaic_0001>

<llo_original>
// kernel: residual_connection.1
$region0: #{residual_connection.1}
  #allocation0 [shape = 'u32[]', space=smem, size = 0x4, offset = 0x4, fixed_abs, tag = 'smem constant byte address 0x4 - core index']
  #allocation1 [shape = 'u32[72,128]{1,0:T(1,128)}', space=vmem, size = 0x9000, scoped, tag = 'internal scratch']
  #allocation2 [shape = 'f32[16,512]{1,0:T(8,128)}', space=vmem, size = 0x8000, scoped, tag = 'scratch operand']
  %s0 = inlined_call_operand.hbm [shape: f32[16,512], index: 0, kind: input, shape index: {}]
  %s1 = inlined_call_operand.hbm [shape: f32[512,512], index: 1, kind: input, shape index: {}]
  %s2 = inlined_call_operand.vmem [shape: f32[1,512], index: 2, kind: input, shape index: {}]
  %s3 = inlined_call_operand.hbm [shape: f32[1,512], index: 3, kind: input, shape index: {}]
  %s4 = inlined_call_operand.hbm [shape: f32[1,512], index: 4, kind: input, shape index: {}]
  %s5 = inlined_call_operand.hbm [shape: f32[16,512], index: 5, kind: output, shape index: {}]
  %s6 = sld [smem:[#allocation0]]
  $region50: #{residual_connection.1} parent=0
    _
  %s8 = ssub.s32 1, %s6
  %s9 = scalar_select 0, %s8, %s6
  $region1: #{residual_connection.1} parent=0
    #allocation3 [shape = 'u8[32768]{0}', space=vmem, size = 0x8000, scoped, tag = 'input window, operand 0, single buffered']
    #allocation4 [shape = 's32[1]{0}', space=sflag, size = 0x4, scoped, tag = 'scoped memory for residual_connection.1']
    #allocation5 [shape = 's32[1]{0}', space=sflag, size = 0x4, scoped, tag = 'scoped memory for residual_connection.1']
    #allocation6 [shape = 'u8[1048576]{0}', space=vmem, size = 0x100000, scoped, tag = 'input window, operand 1, single buffered']
    #allocation7 [shape = 's32[1]{0}', space=sflag, size = 0x4, scoped, tag = 'scoped memory for residual_connection.1']
    #allocation8 [shape = 'u8[2048]{0}', space=vmem, size = 0x800, scoped, tag = 'input window, operand 3, single buffered']
    #allocation9 [shape = 'u8[2048]{0}', space=vmem, size = 0x800, scoped, tag = 'input window, operand 4, single buffered']
    #allocation10 [shape = 's32[1]{0}', space=sflag, size = 0x4, scoped, tag = 'scoped memory for residual_connection.1']
    #allocation11 [shape = 'u8[32768]{0}', space=vmem, size = 0x8000, scoped, tag = 'output window, operand 0, single buffered']
    %10 = vsyncpa [#allocation4], 0
    %11 = vsyncpa [#allocation7], 0
    %12 = vsyncpa [#allocation10], 0
    %13 = vsyncpa [#allocation5], 0
    // Predicated region
    $region2: #{residual_connection.1} parent=1 // pred_check
      _
    $region3: #{residual_connection.1} parent=1 // pred_check_branch
      %15 = sbr.rel (0) target = $region5
    $region4: #{residual_connection.1} parent=1 // pred_region
      %17 = vsyncadd [#allocation4], 0
      %s18 = sshll.u32 %s0, 4
      %s19 = int_to_ptr.hbm [resolvable:$true] %s18
      %s20 = sshll.u32 [#allocation3], 4
      %s21 = int_to_ptr.vmem [resolvable:$true] %s20
      %26 = dma.hbm_to_vmem [thread:$0]  %s19, 1024, %s21, [#allocation4], 512, 512, 32
    $region5: #{residual_connection.1} parent=1 // pred_fallthru
      _
    // Predicated region
    $region6: #{residual_connection.1} parent=1 // pred_check
      _
    $region7: #{residual_connection.1} parent=1 // pred_check_branch
      %28 = sbr.rel (0) target = $region9
    $region8: #{residual_connection.1} parent=1 // pred_region
      %30 = vsyncadd [#allocation7], 0
      %s31 = sshll.u32 %s1, 4
      %s32 = int_to_ptr.hbm [resolvable:$true] %s31
      %s33 = sshll.u32 [#allocation6], 4
      %s34 = int_to_ptr.vmem [resolvable:$true] %s33
      %39 = dma.hbm_to_vmem [thread:$0]  %s32, 32768, %s34, [#allocation7], 512, 512, 32
    $region9: #{residual_connection.1} parent=1 // pred_fallthru
      _
    // Predicated region
    $region10: #{residual_connection.1} parent=1 // pred_check
      _
    $region11: #{residual_connection.1} parent=1 // pred_check_branch
      %41 = sbr.rel (0) target = $region13
    $region12: #{residual_connection.1} parent=1 // pred_region
      _
    $region13: #{residual_connection.1} parent=1 // pred_fallthru
      _
    // Predicated region
    $region14: #{residual_connection.1} parent=1 // pred_check
      _
    $region15: #{residual_connection.1} parent=1 // pred_check_branch
      %43 = sbr.rel (0) target = $region17
    $region16: #{residual_connection.1} parent=1 // pred_region
      %45 = vsyncadd [#allocation7], 0
      %s47 = sshll.u32 %s3, 4
      %s48 = int_to_ptr.hbm [resolvable:$true] %s47
      %s49 = sshll.u32 [#allocation8], 4
      %s50 = int_to_ptr.vmem [resolvable:$true] %s49
      %52 = dma.hbm_to_vmem [thread:$0]  %s48, 64, %s50, [#allocation7]
    $region17: #{residual_connection.1} parent=1 // pred_fallthru
      _
    // Predicated region
    $region18: #{residual_connection.1} parent=1 // pred_check
      _
    $region19: #{residual_connection.1} parent=1 // pred_check_branch
      %54 = sbr.rel (0) target = $region21
    $region20: #{residual_connection.1} parent=1 // pred_region
      %56 = vsyncadd [#allocation10], 0
      %s58 = sshll.u32 %s4, 4
      %s59 = int_to_ptr.hbm [resolvable:$true] %s58
      %s60 = sshll.u32 [#allocation9], 4
      %s61 = int_to_ptr.vmem [resolvable:$true] %s60
      %63 = dma.hbm_to_vmem [thread:$0]  %s59, 64, %s61, [#allocation10]
    $region21: #{residual_connection.1} parent=1 // pred_fallthru
      _
    // Predicated region
    $region22: #{residual_connection.1} parent=1 // pred_check
      _
    $region23: #{residual_connection.1} parent=1 // pred_check_branch
      %65 = sbr.rel (0) target = $region25
    $region24: #{residual_connection.1} parent=1 // pred_region
      %67 = dma.done [#allocation4], 1024
    $region25: #{residual_connection.1} parent=1 // pred_fallthru
      _
    // Predicated region
    $region26: #{residual_connection.1} parent=1 // pred_check
      _
    $region27: #{residual_connection.1} parent=1 // pred_check_branch
      %69 = sbr.rel (0) target = $region29
    $region28: #{residual_connection.1} parent=1 // pred_region
      %71 = dma.done [#allocation7], 32768
    $region29: #{residual_connection.1} parent=1 // pred_fallthru
      _
    // Predicated region
    $region30: #{residual_connection.1} parent=1 // pred_check
      _
    $region31: #{residual_connection.1} parent=1 // pred_check_branch
      %73 = sbr.rel (0) target = $region33
    $region32: #{residual_connection.1} parent=1 // pred_region
      %75 = dma.done [#allocation7], 64
    $region33: #{residual_connection.1} parent=1 // pred_fallthru
      _
    // Predicated region
    $region34: #{residual_connection.1} parent=1 // pred_check
      _
    $region35: #{residual_connection.1} parent=1 // pred_check_branch
      %77 = sbr.rel (0) target = $region37
    $region36: #{residual_connection.1} parent=1 // pred_region
      %79 = dma.done [#allocation10], 64
    $region37: #{residual_connection.1} parent=1 // pred_fallthru
      _
    %p80 = scmp.eq.s32.totalorder 0, 0
    // Predicated region
    $region38: #{residual_connection.1} parent=1 // pred_check
      %p81 = pneg %p80
    $region39: #{residual_connection.1} parent=1 // pred_check_branch
      %83 = sbr.rel (%p81) target = $region41
    $region40: #{residual_connection.1} parent=1 // pred_region
      %v84 = vld [vmem:[#allocation3] sm:$0xff]
      %v85 = vld [vmem:[#allocation3 + $0x8] sm:$0xff]
      %v86 = vld [vmem:[#allocation3 + $0x10] sm:$0xff]
      %v87 = vld [vmem:[#allocation3 + $0x18] sm:$0xff]
      %v88 = vld [vmem:[#allocation3 + $0x20] sm:$0xff]
      %v89 = vld [vmem:[#allocation3 + $0x28] sm:$0xff]
      %v90 = vld [vmem:[#allocation3 + $0x30] sm:$0xff]
      %v91 = vld [vmem:[#allocation3 + $0x38] sm:$0xff]
      %v92 = vadd.f32 %v84, %v85
      %v93 = vadd.f32 %v92, %v86
      %v94 = vadd.f32 %v93, %v87
      %95 = vadd.xlane.f32.xlu0 %v94
      %v96 = vpop.xlane.xlu0 %95
      %v97 = vadd.f32 %v88, %v89
      %v98 = vadd.f32 %v97, %v90
      %v99 = vadd.f32 %v98, %v91
      %100 = vadd.xlane.f32.xlu0 %v99
      %v101 = vpop.xlane.xlu0 %100
      %v102 = vmul.f32 %v96, 0.001953125
      %v103 = vmul.f32 %v101, 0.001953125
      %v104 = vsub.f32 %v84, %v102
      %v105 = vsub.f32 %v85, %v102
      %v106 = vsub.f32 %v86, %v102
      %v107 = vsub.f32 %v87, %v102
      %v108 = vsub.f32 %v88, %v103
      %v109 = vsub.f32 %v89, %v103
      %v110 = vsub.f32 %v90, %v103
      %v111 = vsub.f32 %v91, %v103
      %v112 = vmul.f32 %v104, %v104
      %v113 = vmul.f32 %v105, %v105
      %v114 = vmul.f32 %v106, %v106
      %v115 = vmul.f32 %v107, %v107
      %v116 = vmul.f32 %v108, %v108
      %v117 = vmul.f32 %v109, %v109
      %v118 = vmul.f32 %v110, %v110
      %v119 = vmul.f32 %v111, %v111
      %v120 = vadd.f32 %v112, %v113
      %v121 = vadd.f32 %v120, %v114
      %v122 = vadd.f32 %v121, %v115
      %123 = vadd.xlane.f32.xlu0 %v122
      %v124 = vpop.xlane.xlu0 %123
      %v125 = vadd.f32 %v116, %v117
      %v126 = vadd.f32 %v125, %v118
      %v127 = vadd.f32 %v126, %v119
      %128 = vadd.xlane.f32.xlu0 %v127
      %v129 = vpop.xlane.xlu0 %128
      %v130 = vmul.f32 %v124, 0.0019569471
      %v131 = vmul.f32 %v129, 0.0019569471
      %v132 = vrsqrt.pop %v130
      %v133 = vmul.f32 %v132, %v130
      %v134 = vmul.f32 %v133, %v132
      %v135 = vmul.f32 0.5, %v134
      %v136 = vsub.f32 1.5, %v135
      %v137 = vmul.f32 %v132, %v136
      %v138 = vmul.f32 %v130, %v137
      %vm139 = vcmp.eq.f32.partialorder %v130, inf
      %v140 = vsel %vm139, %v130, %v138
      %vm141 = vcmp.eq.f32.partialorder %v130, 0.0
      %v142 = vand.u32 %v130, 2147483648
      %v143 = vsel %vm141, %v142, %v140
      %v144 = vrsqrt.pop %v131
      %v145 = vmul.f32 %v144, %v131
      %v146 = vmul.f32 %v145, %v144
      %v147 = vmul.f32 0.5, %v146
      %v148 = vsub.f32 1.5, %v147
      %v149 = vmul.f32 %v144, %v148
      %v150 = vmul.f32 %v131, %v149
      %vm151 = vcmp.eq.f32.partialorder %v131, inf
      %v152 = vsel %vm151, %v131, %v150
      %vm153 = vcmp.eq.f32.partialorder %v131, 0.0
      %v154 = vand.u32 %v131, 2147483648
      %v155 = vsel %vm153, %v154, %v152
      %v156 = vadd.f32 %v143, 1e-06
      %v157 = vadd.f32 %v155, 1e-06
      %v158 = vrcp.pop %v156
      %v159 = vmul.f32 %v156, %v158
      %v160 = vsub.f32 1.0, %v159
      %v161 = vmul.f32 %v158, %v160
      %v162 = vadd.f32 %v158, %v161
      %vm163 = vweird.f32 %v156
      %vm164 = vweird.f32 %v158
      %vm165 = vmor %vm163, %vm164
      %v166 = vsel %vm165, %v158, %v162
      %v167 = vand.u32 2147483647, %v156
      %vm168 = vcmp.eq.f32.partialorder %v167, 8.507059e+37
      %v169 = vand.u32 %v156, 2147483648
      %v170 = vor.u32 1.1754944e-38, %v169
      %v171 = vsel %vm168, %v170, %v166
      %v172 = vmul.f32 1.0, %v171
      %v173 = vrcp.pop %v157
      %v174 = vmul.f32 %v157, %v173
      %v175 = vsub.f32 1.0, %v174
      %v176 = vmul.f32 %v173, %v175
      %v177 = vadd.f32 %v173, %v176
      %vm178 = vweird.f32 %v157
      %vm179 = vweird.f32 %v173
      %vm180 = vmor %vm178, %vm179
      %v181 = vsel %vm180, %v173, %v177
      %v182 = vand.u32 2147483647, %v157
      %vm183 = vcmp.eq.f32.partialorder %v182, 8.507059e+37
      %v184 = vand.u32 %v157, 2147483648
      %v185 = vor.u32 1.1754944e-38, %v184
      %v186 = vsel %vm183, %v185, %v181
      %v187 = vmul.f32 1.0, %v186
      %v188 = vld [vmem:[#allocation8] sm:$0xf]
      %v189 = vmul.f32 %v104, %v172
      %v190 = vmul.f32 %v105, %v172
      %v191 = vmul.f32 %v106, %v172
      %v192 = vmul.f32 %v107, %v172
      %v193 = vmul.f32 %v108, %v187
      %v194 = vmul.f32 %v109, %v187
      %v195 = vmul.f32 %v110, %v187
      %v196 = vmul.f32 %v111, %v187
      %v198 = vperm.slane %v188, 0
      %v199 = vperm.slane %v188, 1
      %v200 = vperm.slane %v188, 2
      %v201 = vperm.slane %v188, 3
      %v206 = vmul.f32 %v198, %v189
      %v207 = vmul.f32 %v199, %v190
      %v208 = vmul.f32 %v200, %v191
      %v209 = vmul.f32 %v201, %v192
      %v210 = vmul.f32 %v198, %v193
      %v211 = vmul.f32 %v199, %v194
      %v212 = vmul.f32 %v200, %v195
      %v213 = vmul.f32 %v201, %v196
      %v214 = vld [vmem:[#allocation9] sm:$0xf]
      %v216 = vperm.slane %v214, 0
      %v217 = vperm.slane %v214, 1
      %v218 = vperm.slane %v214, 2
      %v219 = vperm.slane %v214, 3
      %v224 = vadd.f32 %v206, %v216
      %v225 = vadd.f32 %v207, %v217
      %v226 = vadd.f32 %v208, %v218
      %v227 = vadd.f32 %v209, %v219
      %v228 = vadd.f32 %v210, %v216
      %v229 = vadd.f32 %v211, %v217
      %v230 = vadd.f32 %v212, %v218
      %v231 = vadd.f32 %v213, %v219
      %232 = vst [vmem:[#allocation2] sm:$0xff] %v224
      %233 = vst [vmem:[#allocation2 + $0x8] sm:$0xff] %v225
      %234 = vst [vmem:[#allocation2 + $0x10] sm:$0xff] %v226
      %235 = vst [vmem:[#allocation2 + $0x18] sm:$0xff] %v227
      %236 = vst [vmem:[#allocation2 + $0x20] sm:$0xff] %v228
      %237 = vst [vmem:[#allocation2 + $0x28] sm:$0xff] %v229
      %238 = vst [vmem:[#allocation2 + $0x30] sm:$0xff] %v230
      %239 = vst [vmem:[#allocation2 + $0x38] sm:$0xff] %v231
    $region41: #{residual_connection.1} parent=1 // pred_fallthru
      _
    %v240 = vld [vmem:[#allocation2] sm:$0xff]
    %v241 = vld [vmem:[#allocation2 + $0x8] sm:$0xff]
    %v242 = vld [vmem:[#allocation2 + $0x10] sm:$0xff]
    %v243 = vld [vmem:[#allocation2 + $0x18] sm:$0xff]
    %v244 = vld [vmem:[#allocation2 + $0x20] sm:$0xff]
    %v245 = vld [vmem:[#allocation2 + $0x28] sm:$0xff]
    %v246 = vld [vmem:[#allocation2 + $0x30] sm:$0xff]
    %v247 = vld [vmem:[#allocation2 + $0x38] sm:$0xff]
    %v248 = vld [vmem:[#allocation6] sm:$0xff]
    %v249 = vld [vmem:[#allocation6 + $0x8] sm:$0xff]
    %v250 = vld [vmem:[#allocation6 + $0x10] sm:$0xff]
    %v251 = vld [vmem:[#allocation6 + $0x18] sm:$0xff]
    %v252 = vld [vmem:[#allocation6 + $0x20] sm:$0xff]
    %v253 = vld [vmem:[#allocation6 + $0x28] sm:$0xff]
    %v254 = vld [vmem:[#allocation6 + $0x30] sm:$0xff]
    %v255 = vld [vmem:[#allocation6 + $0x38] sm:$0xff]
    %v256 = vld [vmem:[#allocation6 + $0x40] sm:$0xff]
    %v257 = vld [vmem:[#allocation6 + $0x48] sm:$0xff]
    %v258 = vld [vmem:[#allocation6 + $0x50] sm:$0xff]
    %v259 = vld [vmem:[#allocation6 + $0x58] sm:$0xff]
    %v260 = vld [vmem:[#allocation6 + $0x60] sm:$0xff]
    %v261 = vld [vmem:[#allocation6 + $0x68] sm:$0xff]
    %v262 = vld [vmem:[#allocation6 + $0x70] sm:$0xff]
    %v263 = vld [vmem:[#allocation6 + $0x78] sm:$0xff]
    %v264 = vld [vmem:[#allocation6 + $0x80] sm:$0xff]
    %v265 = vld [vmem:[#allocation6 + $0x88] sm:$0xff]
    %v266 = vld [vmem:[#allocation6 + $0x90] sm:$0xff]
    %v267 = vld [vmem:[#allocation6 + $0x98] sm:$0xff]
    %v268 = vld [vmem:[#allocation6 + $0xa0] sm:$0xff]
    %v269 = vld [vmem:[#allocation6 + $0xa8] sm:$0xff]
    %v270 = vld [vmem:[#allocation6 + $0xb0] sm:$0xff]
    %v271 = vld [vmem:[#allocation6 + $0xb8] sm:$0xff]
    %v272 = vld [vmem:[#allocation6 + $0xc0] sm:$0xff]
    %v273 = vld [vmem:[#allocation6 + $0xc8] sm:$0xff]
    %v274 = vld [vmem:[#allocation6 + $0xd0] sm:$0xff]
    %v275 = vld [vmem:[#allocation6 + $0xd8] sm:$0xff]
    %v276 = vld [vmem:[#allocation6 + $0xe0] sm:$0xff]
    %v277 = vld [vmem:[#allocation6 + $0xe8] sm:$0xff]
    %v278 = vld [vmem:[#allocation6 + $0xf0] sm:$0xff]
    %v279 = vld [vmem:[#allocation6 + $0xf8] sm:$0xff]
    %v280 = vld [vmem:[#allocation6 + $0x100] sm:$0xff]
    %v281 = vld [vmem:[#allocation6 + $0x108] sm:$0xff]
    %v282 = vld [vmem:[#allocation6 + $0x110] sm:$0xff]
    %v283 = vld [vmem:[#allocation6 + $0x118] sm:$0xff]
    %v284 = vld [vmem:[#allocation6 + $0x120] sm:$0xff]
    %v285 = vld [vmem:[#allocation6 + $0x128] sm:$0xff]
    %v286 = vld [vmem:[#allocation6 + $0x130] sm:$0xff]
    %v287 = vld [vmem:[#allocation6 + $0x138] sm:$0xff]
    %v288 = vld [vmem:[#allocation6 + $0x140] sm:$0xff]
    %v289 = vld [vmem:[#allocation6 + $0x148] sm:$0xff]
    %v290 = vld [vmem:[#allocation6 + $0x150] sm:$0xff]
    %v291 = vld [vmem:[#allocation6 + $0x158] sm:$0xff]
    %v292 = vld [vmem:[#allocation6 + $0x160] sm:$0xff]
    %v293 = vld [vmem:[#allocation6 + $0x168] sm:$0xff]
    %v294 = vld [vmem:[#allocation6 + $0x170] sm:$0xff]
    %v295 = vld [vmem:[#allocation6 + $0x178] sm:$0xff]
    %v296 = vld [vmem:[#allocation6 + $0x180] sm:$0xff]
    %v297 = vld [vmem:[#allocation6 + $0x188] sm:$0xff]
    %v298 = vld [vmem:[#allocation6 + $0x190] sm:$0xff]
    %v299 = vld [vmem:[#allocation6 + $0x198] sm:$0xff]
    %v300 = vld [vmem:[#allocation6 + $0x1a0] sm:$0xff]
    %v301 = vld [vmem:[#allocation6 + $0x1a8] sm:$0xff]
    %v302 = vld [vmem:[#allocation6 + $0x1b0] sm:$0xff]
    %v303 = vld [vmem:[#allocation6 + $0x1b8] sm:$0xff]
    %v304 = vld [vmem:[#allocation6 + $0x1c0] sm:$0xff]
    %v305 = vld [vmem:[#allocation6 + $0x1c8] sm:$0xff]
    %v306 = vld [vmem:[#allocation6 + $0x1d0] sm:$0xff]
    %v307 = vld [vmem:[#allocation6 + $0x1d8] sm:$0xff]
    %v308 = vld [vmem:[#allocation6 + $0x1e0] sm:$0xff]
    %v309 = vld [vmem:[#allocation6 + $0x1e8] sm:$0xff]
    %v310 = vld [vmem:[#allocation6 + $0x1f0] sm:$0xff]
    %v311 = vld [vmem:[#allocation6 + $0x1f8] sm:$0xff]
    %v312 = vld [vmem:[#allocation6 + $0x200] sm:$0xff]
    %v313 = vld [vmem:[#allocation6 + $0x208] sm:$0xff]
    %v314 = vld [vmem:[#allocation6 + $0x210] sm:$0xff]
    %v315 = vld [vmem:[#allocation6 + $0x218] sm:$0xff]
    %v316 = vld [vmem:[#allocation6 + $0x220] sm:$0xff]
    %v317 = vld [vmem:[#allocation6 + $0x228] sm:$0xff]
    %v318 = vld [vmem:[#allocation6 + $0x230] sm:$0xff]
    %v319 = vld [vmem:[#allocation6 + $0x238] sm:$0xff]
    %v320 = vld [vmem:[#allocation6 + $0x240] sm:$0xff]
    %v321 = vld [vmem:[#allocation6 + $0x248] sm:$0xff]
    %v322 = vld [vmem:[#allocation6 + $0x250] sm:$0xff]
    %v323 = vld [vmem:[#allocation6 + $0x258] sm:$0xff]
    %v324 = vld [vmem:[#allocation6 + $0x260] sm:$0xff]
    %v325 = vld [vmem:[#allocation6 + $0x268] sm:$0xff]
    %v326 = vld [vmem:[#allocation6 + $0x270] sm:$0xff]
    %v327 = vld [vmem:[#allocation6 + $0x278] sm:$0xff]
    %v328 = vld [vmem:[#allocation6 + $0x280] sm:$0xff]
    %v329 = vld [vmem:[#allocation6 + $0x288] sm:$0xff]
    %v330 = vld [vmem:[#allocation6 + $0x290] sm:$0xff]
    %v331 = vld [vmem:[#allocation6 + $0x298] sm:$0xff]
    %v332 = vld [vmem:[#allocation6 + $0x2a0] sm:$0xff]
    %v333 = vld [vmem:[#allocation6 + $0x2a8] sm:$0xff]
    %v334 = vld [vmem:[#allocation6 + $0x2b0] sm:$0xff]
    %v335 = vld [vmem:[#allocation6 + $0x2b8] sm:$0xff]
    %v336 = vld [vmem:[#allocation6 + $0x2c0] sm:$0xff]
    %v337 = vld [vmem:[#allocation6 + $0x2c8] sm:$0xff]
    %v338 = vld [vmem:[#allocation6 + $0x2d0] sm:$0xff]
    %v339 = vld [vmem:[#allocation6 + $0x2d8] sm:$0xff]
    %v340 = vld [vmem:[#allocation6 + $0x2e0] sm:$0xff]
    %v341 = vld [vmem:[#allocation6 + $0x2e8] sm:$0xff]
    %v342 = vld [vmem:[#allocation6 + $0x2f0] sm:$0xff]
    %v343 = vld [vmem:[#allocation6 + $0x2f8] sm:$0xff]
    %v344 = vld [vmem:[#allocation6 + $0x300] sm:$0xff]
    %v345 = vld [vmem:[#allocation6 + $0x308] sm:$0xff]
    %v346 = vld [vmem:[#allocation6 + $0x310] sm:$0xff]
    %v347 = vld [vmem:[#allocation6 + $0x318] sm:$0xff]
    %v348 = vld [vmem:[#allocation6 + $0x320] sm:$0xff]
    %v349 = vld [vmem:[#allocation6 + $0x328] sm:$0xff]
    %v350 = vld [vmem:[#allocation6 + $0x330] sm:$0xff]
    %v351 = vld [vmem:[#allocation6 + $0x338] sm:$0xff]
    %v352 = vld [vmem:[#allocation6 + $0x340] sm:$0xff]
    %v353 = vld [vmem:[#allocation6 + $0x348] sm:$0xff]
    %v354 = vld [vmem:[#allocation6 + $0x350] sm:$0xff]
    %v355 = vld [vmem:[#allocation6 + $0x358] sm:$0xff]
    %v356 = vld [vmem:[#allocation6 + $0x360] sm:$0xff]
    %v357 = vld [vmem:[#allocation6 + $0x368] sm:$0xff]
    %v358 = vld [vmem:[#allocation6 + $0x370] sm:$0xff]
    %v359 = vld [vmem:[#allocation6 + $0x378] sm:$0xff]
    %v360 = vld [vmem:[#allocation6 + $0x380] sm:$0xff]
    %v361 = vld [vmem:[#allocation6 + $0x388] sm:$0xff]
    %v362 = vld [vmem:[#allocation6 + $0x390] sm:$0xff]
    %v363 = vld [vmem:[#allocation6 + $0x398] sm:$0xff]
    %v364 = vld [vmem:[#allocation6 + $0x3a0] sm:$0xff]
    %v365 = vld [vmem:[#allocation6 + $0x3a8] sm:$0xff]
    %v366 = vld [vmem:[#allocation6 + $0x3b0] sm:$0xff]
    %v367 = vld [vmem:[#allocation6 + $0x3b8] sm:$0xff]
    %v368 = vld [vmem:[#allocation6 + $0x3c0] sm:$0xff]
    %v369 = vld [vmem:[#allocation6 + $0x3c8] sm:$0xff]
    %v370 = vld [vmem:[#allocation6 + $0x3d0] sm:$0xff]
    %v371 = vld [vmem:[#allocation6 + $0x3d8] sm:$0xff]
    %v372 = vld [vmem:[#allocation6 + $0x3e0] sm:$0xff]
    %v373 = vld [vmem:[#allocation6 + $0x3e8] sm:$0xff]
    %v374 = vld [vmem:[#allocation6 + $0x3f0] sm:$0xff]
    %v375 = vld [vmem:[#allocation6 + $0x3f8] sm:$0xff]
    %v376 = vld [vmem:[#allocation6 + $0x400] sm:$0xff]
    %v377 = vld [vmem:[#allocation6 + $0x408] sm:$0xff]
    %v378 = vld [vmem:[#allocation6 + $0x410] sm:$0xff]
    %v379 = vld [vmem:[#allocation6 + $0x418] sm:$0xff]
    %v380 = vld [vmem:[#allocation6 + $0x420] sm:$0xff]
    %v381 = vld [vmem:[#allocation6 + $0x428] sm:$0xff]
    %v382 = vld [vmem:[#allocation6 + $0x430] sm:$0xff]
    %v383 = vld [vmem:[#allocation6 + $0x438] sm:$0xff]
    %v384 = vld [vmem:[#allocation6 + $0x440] sm:$0xff]
    %v385 = vld [vmem:[#allocation6 + $0x448] sm:$0xff]
    %v386 = vld [vmem:[#allocation6 + $0x450] sm:$0xff]
    %v387 = vld [vmem:[#allocation6 + $0x458] sm:$0xff]
    %v388 = vld [vmem:[#allocation6 + $0x460] sm:$0xff]
    %v389 = vld [vmem:[#allocation6 + $0x468] sm:$0xff]
    %v390 = vld [vmem:[#allocation6 + $0x470] sm:$0xff]
    %v391 = vld [vmem:[#allocation6 + $0x478] sm:$0xff]
    %v392 = vld [vmem:[#allocation6 + $0x480] sm:$0xff]
    %v393 = vld [vmem:[#allocation6 + $0x488] sm:$0xff]
    %v394 = vld [vmem:[#allocation6 + $0x490] sm:$0xff]
    %v395 = vld [vmem:[#allocation6 + $0x498] sm:$0xff]
    %v396 = vld [vmem:[#allocation6 + $0x4a0] sm:$0xff]
    %v397 = vld [vmem:[#allocation6 + $0x4a8] sm:$0xff]
    %v398 = vld [vmem:[#allocation6 + $0x4b0] sm:$0xff]
    %v399 = vld [vmem:[#allocation6 + $0x4b8] sm:$0xff]
    %v400 = vld [vmem:[#allocation6 + $0x4c0] sm:$0xff]
    %v401 = vld [vmem:[#allocation6 + $0x4c8] sm:$0xff]
    %v402 = vld [vmem:[#allocation6 + $0x4d0] sm:$0xff]
    %v403 = vld [vmem:[#allocation6 + $0x4d8] sm:$0xff]
    %v404 = vld [vmem:[#allocation6 + $0x4e0] sm:$0xff]
    %v405 = vld [vmem:[#allocation6 + $0x4e8] sm:$0xff]
    %v406 = vld [vmem:[#allocation6 + $0x4f0] sm:$0xff]
    %v407 = vld [vmem:[#allocation6 + $0x4f8] sm:$0xff]
    %v408 = vld [vmem:[#allocation6 + $0x500] sm:$0xff]
    %v409 = vld [vmem:[#allocation6 + $0x508] sm:$0xff]
    %v410 = vld [vmem:[#allocation6 + $0x510] sm:$0xff]
    %v411 = vld [vmem:[#allocation6 + $0x518] sm:$0xff]
    %v412 = vld [vmem:[#allocation6 + $0x520] sm:$0xff]
    %v413 = vld [vmem:[#allocation6 + $0x528] sm:$0xff]
    %v414 = vld [vmem:[#allocation6 + $0x530] sm:$0xff]
    %v415 = vld [vmem:[#allocation6 + $0x538] sm:$0xff]
    %v416 = vld [vmem:[#allocation6 + $0x540] sm:$0xff]
    %v417 = vld [vmem:[#allocation6 + $0x548] sm:$0xff]
    %v418 = vld [vmem:[#allocation6 + $0x550] sm:$0xff]
    %v419 = vld [vmem:[#allocation6 + $0x558] sm:$0xff]
    %v420 = vld [vmem:[#allocation6 + $0x560] sm:$0xff]
    %v421 = vld [vmem:[#allocation6 + $0x568] sm:$0xff]
    %v422 = vld [vmem:[#allocation6 + $0x570] sm:$0xff]
    %v423 = vld [vmem:[#allocation6 + $0x578] sm:$0xff]
    %v424 = vld [vmem:[#allocation6 + $0x580] sm:$0xff]
    %v425 = vld [vmem:[#allocation6 + $0x588] sm:$0xff]
    %v426 = vld [vmem:[#allocation6 + $0x590] sm:$0xff]
    %v427 = vld [vmem:[#allocation6 + $0x598] sm:$0xff]
    %v428 = vld [vmem:[#allocation6 + $0x5a0] sm:$0xff]
    %v429 = vld [vmem:[#allocation6 + $0x5a8] sm:$0xff]
    %v430 = vld [vmem:[#allocation6 + $0x5b0] sm:$0xff]
    %v431 = vld [vmem:[#allocation6 + $0x5b8] sm:$0xff]
    %v432 = vld [vmem:[#allocation6 + $0x5c0] sm:$0xff]
    %v433 = vld [vmem:[#allocation6 + $0x5c8] sm:$0xff]
    %v434 = vld [vmem:[#allocation6 + $0x5d0] sm:$0xff]
    %v435 = vld [vmem:[#allocation6 + $0x5d8] sm:$0xff]
    %v436 = vld [vmem:[#allocation6 + $0x5e0] sm:$0xff]
    %v437 = vld [vmem:[#allocation6 + $0x5e8] sm:$0xff]
    %v438 = vld [vmem:[#allocation6 + $0x5f0] sm:$0xff]
    %v439 = vld [vmem:[#allocation6 + $0x5f8] sm:$0xff]
    %v440 = vld [vmem:[#allocation6 + $0x600] sm:$0xff]
    %v441 = vld [vmem:[#allocation6 + $0x608] sm:$0xff]
    %v442 = vld [vmem:[#allocation6 + $0x610] sm:$0xff]
    %v443 = vld [vmem:[#allocation6 + $0x618] sm:$0xff]
    %v444 = vld [vmem:[#allocation6 + $0x620] sm:$0xff]
    %v445 = vld [vmem:[#allocation6 + $0x628] sm:$0xff]
    %v446 = vld [vmem:[#allocation6 + $0x630] sm:$0xff]
    %v447 = vld [vmem:[#allocation6 + $0x638] sm:$0xff]
    %v448 = vld [vmem:[#allocation6 + $0x640] sm:$0xff]
    %v449 = vld [vmem:[#allocation6 + $0x648] sm:$0xff]
    %v450 = vld [vmem:[#allocation6 + $0x650] sm:$0xff]
    %v451 = vld [vmem:[#allocation6 + $0x658] sm:$0xff]
    %v452 = vld [vmem:[#allocation6 + $0x660] sm:$0xff]
    %v453 = vld [vmem:[#allocation6 + $0x668] sm:$0xff]
    %v454 = vld [vmem:[#allocation6 + $0x670] sm:$0xff]
    %v455 = vld [vmem:[#allocation6 + $0x678] sm:$0xff]
    %v456 = vld [vmem:[#allocation6 + $0x680] sm:$0xff]
    %v457 = vld [vmem:[#allocation6 + $0x688] sm:$0xff]
    %v458 = vld [vmem:[#allocation6 + $0x690] sm:$0xff]
    %v459 = vld [vmem:[#allocation6 + $0x698] sm:$0xff]
    %v460 = vld [vmem:[#allocation6 + $0x6a0] sm:$0xff]
    %v461 = vld [vmem:[#allocation6 + $0x6a8] sm:$0xff]
    %v462 = vld [vmem:[#allocation6 + $0x6b0] sm:$0xff]
    %v463 = vld [vmem:[#allocation6 + $0x6b8] sm:$0xff]
    %v464 = vld [vmem:[#allocation6 + $0x6c0] sm:$0xff]
    %v465 = vld [vmem:[#allocation6 + $0x6c8] sm:$0xff]
    %v466 = vld [vmem:[#allocation6 + $0x6d0] sm:$0xff]
    %v467 = vld [vmem:[#allocation6 + $0x6d8] sm:$0xff]
    %v468 = vld [vmem:[#allocation6 + $0x6e0] sm:$0xff]
    %v469 = vld [vmem:[#allocation6 + $0x6e8] sm:$0xff]
    %v470 = vld [vmem:[#allocation6 + $0x6f0] sm:$0xff]
    %v471 = vld [vmem:[#allocation6 + $0x6f8] sm:$0xff]
    %v472 = vld [vmem:[#allocation6 + $0x700] sm:$0xff]
    %v473 = vld [vmem:[#allocation6 + $0x708] sm:$0xff]
    %v474 = vld [vmem:[#allocation6 + $0x710] sm:$0xff]
    %v475 = vld [vmem:[#allocation6 + $0x718] sm:$0xff]
    %v476 = vld [vmem:[#allocation6 + $0x720] sm:$0xff]
    %v477 = vld [vmem:[#allocation6 + $0x728] sm:$0xff]
    %v478 = vld [vmem:[#allocation6 + $0x730] sm:$0xff]
    %v479 = vld [vmem:[#allocation6 + $0x738] sm:$0xff]
    %v480 = vld [vmem:[#allocation6 + $0x740] sm:$0xff]
    %v481 = vld [vmem:[#allocation6 + $0x748] sm:$0xff]
    %v482 = vld [vmem:[#allocation6 + $0x750] sm:$0xff]
    %v483 = vld [vmem:[#allocation6 + $0x758] sm:$0xff]
    %v484 = vld [vmem:[#allocation6 + $0x760] sm:$0xff]
    %v485 = vld [vmem:[#allocation6 + $0x768] sm:$0xff]
    %v486 = vld [vmem:[#allocation6 + $0x770] sm:$0xff]
    %v487 = vld [vmem:[#allocation6 + $0x778] sm:$0xff]
    %v488 = vld [vmem:[#allocation6 + $0x780] sm:$0xff]
    %v489 = vld [vmem:[#allocation6 + $0x788] sm:$0xff]
    %v490 = vld [vmem:[#allocation6 + $0x790] sm:$0xff]
    %v491 = vld [vmem:[#allocation6 + $0x798] sm:$0xff]
    %v492 = vld [vmem:[#allocation6 + $0x7a0] sm:$0xff]
    %v493 = vld [vmem:[#allocation6 + $0x7a8] sm:$0xff]
    %v494 = vld [vmem:[#allocation6 + $0x7b0] sm:$0xff]
    %v495 = vld [vmem:[#allocation6 + $0x7b8] sm:$0xff]
    %v496 = vld [vmem:[#allocation6 + $0x7c0] sm:$0xff]
    %v497 = vld [vmem:[#allocation6 + $0x7c8] sm:$0xff]
    %v498 = vld [vmem:[#allocation6 + $0x7d0] sm:$0xff]
    %v499 = vld [vmem:[#allocation6 + $0x7d8] sm:$0xff]
    %v500 = vld [vmem:[#allocation6 + $0x7e0] sm:$0xff]
    %v501 = vld [vmem:[#allocation6 + $0x7e8] sm:$0xff]
    %v502 = vld [vmem:[#allocation6 + $0x7f0] sm:$0xff]
    %v503 = vld [vmem:[#allocation6 + $0x7f8] sm:$0xff]
    %v504 = vld [vmem:[%s2] sm:$0xf]
    %v506 = vperm.slane %v504, 0
    %v507 = vperm.slane %v504, 1
    %v508 = vperm.slane %v504, 2
    %v509 = vperm.slane %v504, 3
    %514 = vmatpush.msra.mxu0 %v308
    %515 = vmatpush.msra.mxu0 %v304
    %516 = vmatpush.msra.mxu0 %v300
    %517 = vmatpush.msra.mxu0 %v296
    %518 = vmatpush.msra.mxu0 %v292
    %519 = vmatpush.msra.mxu0 %v288
    %520 = vmatpush.msra.mxu0 %v284
    %521 = vmatpush.msra.mxu0 %v280
    %522 = vmatpush.msra.mxu0 %v276
    %523 = vmatpush.msra.mxu0 %v272
    %524 = vmatpush.msra.mxu0 %v268
    %525 = vmatpush.msra.mxu0 %v264
    %526 = vmatpush.msra.mxu0 %v260
    %527 = vmatpush.msra.mxu0 %v256
    %528 = vmatpush.msra.mxu0 %v252
    %529 = vmatpush.msra.mxu0 %v248
    %530 = vmatmul.f32.gmra.mxu0 %v240
    %v531 = vpop.f32.mrf.mxu0
    %v532 = vadd.f32 %v506, %v531
    %533 = vmatmul.f32.gmra.mxu0 %v244
    %v534 = vpop.f32.mrf.mxu0
    %v535 = vadd.f32 %v506, %v534
    %536 = vdwg.mxu0
    %537 = vmatpush.msra.mxu0 %v372
    %538 = vmatpush.msra.mxu0 %v368
    %539 = vmatpush.msra.mxu0 %v364
    %540 = vmatpush.msra.mxu0 %v360
    %541 = vmatpush.msra.mxu0 %v356
    %542 = vmatpush.msra.mxu0 %v352
    %543 = vmatpush.msra.mxu0 %v348
    %544 = vmatpush.msra.mxu0 %v344
    %545 = vmatpush.msra.mxu0 %v340
    %546 = vmatpush.msra.mxu0 %v336
    %547 = vmatpush.msra.mxu0 %v332
    %548 = vmatpush.msra.mxu0 %v328
    %549 = vmatpush.msra.mxu0 %v324
    %550 = vmatpush.msra.mxu0 %v320
    %551 = vmatpush.msra.mxu0 %v316
    %552 = vmatpush.msra.mxu0 %v312
    %553 = vmatmul.f32.gmra.mxu0 %v241
    %v554 = vpop.f32.mrf.mxu0
    %v555 = vadd.f32 %v532, %v554
    %556 = vmatmul.f32.gmra.mxu0 %v245
    %v557 = vpop.f32.mrf.mxu0
    %v558 = vadd.f32 %v535, %v557
    %559 = vdwg.mxu0
    %560 = vmatpush.msra.mxu0 %v436
    %561 = vmatpush.msra.mxu0 %v432
    %562 = vmatpush.msra.mxu0 %v428
    %563 = vmatpush.msra.mxu0 %v424
    %564 = vmatpush.msra.mxu0 %v420
    %565 = vmatpush.msra.mxu0 %v416
    %566 = vmatpush.msra.mxu0 %v412
    %567 = vmatpush.msra.mxu0 %v408
    %568 = vmatpush.msra.mxu0 %v404
    %569 = vmatpush.msra.mxu0 %v400
    %570 = vmatpush.msra.mxu0 %v396
    %571 = vmatpush.msra.mxu0 %v392
    %572 = vmatpush.msra.mxu0 %v388
    %573 = vmatpush.msra.mxu0 %v384
    %574 = vmatpush.msra.mxu0 %v380
    %575 = vmatpush.msra.mxu0 %v376
    %576 = vmatmul.f32.gmra.mxu0 %v242
    %v577 = vpop.f32.mrf.mxu0
    %v578 = vadd.f32 %v555, %v577
    %579 = vmatmul.f32.gmra.mxu0 %v246
    %v580 = vpop.f32.mrf.mxu0
    %v581 = vadd.f32 %v558, %v580
    %582 = vdwg.mxu0
    %583 = vmatpush.msra.mxu0 %v500
    %584 = vmatpush.msra.mxu0 %v496
    %585 = vmatpush.msra.mxu0 %v492
    %586 = vmatpush.msra.mxu0 %v488
    %587 = vmatpush.msra.mxu0 %v484
    %588 = vmatpush.msra.mxu0 %v480
    %589 = vmatpush.msra.mxu0 %v476
    %590 = vmatpush.msra.mxu0 %v472
    %591 = vmatpush.msra.mxu0 %v468
    %592 = vmatpush.msra.mxu0 %v464
    %593 = vmatpush.msra.mxu0 %v460
    %594 = vmatpush.msra.mxu0 %v456
    %595 = vmatpush.msra.mxu0 %v452
    %596 = vmatpush.msra.mxu0 %v448
    %597 = vmatpush.msra.mxu0 %v444
    %598 = vmatpush.msra.mxu0 %v440
    %599 = vmatmul.f32.gmra.mxu0 %v243
    %v600 = vpop.f32.mrf.mxu0
    %v601 = vadd.f32 %v578, %v600
    %602 = vmatmul.f32.gmra.mxu0 %v247
    %v603 = vpop.f32.mrf.mxu0
    %v604 = vadd.f32 %v581, %v603
    %605 = vdwg.mxu0
    %606 = vmatpush.msra.mxu0 %v309
    %607 = vmatpush.msra.mxu0 %v305
    %608 = vmatpush.msra.mxu0 %v301
    %609 = vmatpush.msra.mxu0 %v297
    %610 = vmatpush.msra.mxu0 %v293
    %611 = vmatpush.msra.mxu0 %v289
    %612 = vmatpush.msra.mxu0 %v285
    %613 = vmatpush.msra.mxu0 %v281
    %614 = vmatpush.msra.mxu0 %v277
    %615 = vmatpush.msra.mxu0 %v273
    %616 = vmatpush.msra.mxu0 %v269
    %617 = vmatpush.msra.mxu0 %v265
    %618 = vmatpush.msra.mxu0 %v261
    %619 = vmatpush.msra.mxu0 %v257
    %620 = vmatpush.msra.mxu0 %v253
    %621 = vmatpush.msra.mxu0 %v249
    %622 = vmatmul.f32.gmra.mxu0 %v240
    %v623 = vpop.f32.mrf.mxu0
    %v624 = vadd.f32 %v507, %v623
    %625 = vmatmul.f32.gmra.mxu0 %v244
    %v626 = vpop.f32.mrf.mxu0
    %v627 = vadd.f32 %v507, %v626
    %628 = vdwg.mxu0
    %629 = vmatpush.msra.mxu0 %v373
    %630 = vmatpush.msra.mxu0 %v369
    %631 = vmatpush.msra.mxu0 %v365
    %632 = vmatpush.msra.mxu0 %v361
    %633 = vmatpush.msra.mxu0 %v357
    %634 = vmatpush.msra.mxu0 %v353
    %635 = vmatpush.msra.mxu0 %v349
    %636 = vmatpush.msra.mxu0 %v345
    %637 = vmatpush.msra.mxu0 %v341
    %638 = vmatpush.msra.mxu0 %v337
    %639 = vmatpush.msra.mxu0 %v333
    %640 = vmatpush.msra.mxu0 %v329
    %641 = vmatpush.msra.mxu0 %v325
    %642 = vmatpush.msra.mxu0 %v321
    %643 = vmatpush.msra.mxu0 %v317
    %644 = vmatpush.msra.mxu0 %v313
    %645 = vmatmul.f32.gmra.mxu0 %v241
    %v646 = vpop.f32.mrf.mxu0
    %v647 = vadd.f32 %v624, %v646
    %648 = vmatmul.f32.gmra.mxu0 %v245
    %v649 = vpop.f32.mrf.mxu0
    %v650 = vadd.f32 %v627, %v649
    %651 = vdwg.mxu0
    %652 = vmatpush.msra.mxu0 %v437
    %653 = vmatpush.msra.mxu0 %v433
    %654 = vmatpush.msra.mxu0 %v429
    %655 = vmatpush.msra.mxu0 %v425
    %656 = vmatpush.msra.mxu0 %v421
    %657 = vmatpush.msra.mxu0 %v417
    %658 = vmatpush.msra.mxu0 %v413
    %659 = vmatpush.msra.mxu0 %v409
    %660 = vmatpush.msra.mxu0 %v405
    %661 = vmatpush.msra.mxu0 %v401
    %662 = vmatpush.msra.mxu0 %v397
    %663 = vmatpush.msra.mxu0 %v393
    %664 = vmatpush.msra.mxu0 %v389
    %665 = vmatpush.msra.mxu0 %v385
    %666 = vmatpush.msra.mxu0 %v381
    %667 = vmatpush.msra.mxu0 %v377
    %668 = vmatmul.f32.gmra.mxu0 %v242
    %v669 = vpop.f32.mrf.mxu0
    %v670 = vadd.f32 %v647, %v669
    %671 = vmatmul.f32.gmra.mxu0 %v246
    %v672 = vpop.f32.mrf.mxu0
    %v673 = vadd.f32 %v650, %v672
    %674 = vdwg.mxu0
    %675 = vmatpush.msra.mxu0 %v501
    %676 = vmatpush.msra.mxu0 %v497
    %677 = vmatpush.msra.mxu0 %v493
    %678 = vmatpush.msra.mxu0 %v489
    %679 = vmatpush.msra.mxu0 %v485
    %680 = vmatpush.msra.mxu0 %v481
    %681 = vmatpush.msra.mxu0 %v477
    %682 = vmatpush.msra.mxu0 %v473
    %683 = vmatpush.msra.mxu0 %v469
    %684 = vmatpush.msra.mxu0 %v465
    %685 = vmatpush.msra.mxu0 %v461
    %686 = vmatpush.msra.mxu0 %v457
    %687 = vmatpush.msra.mxu0 %v453
    %688 = vmatpush.msra.mxu0 %v449
    %689 = vmatpush.msra.mxu0 %v445
    %690 = vmatpush.msra.mxu0 %v441
    %691 = vmatmul.f32.gmra.mxu0 %v243
    %v692 = vpop.f32.mrf.mxu0
    %v693 = vadd.f32 %v670, %v692
    %694 = vmatmul.f32.gmra.mxu0 %v247
    %v695 = vpop.f32.mrf.mxu0
    %v696 = vadd.f32 %v673, %v695
    %697 = vdwg.mxu0
    %698 = vmatpush.msra.mxu0 %v310
    %699 = vmatpush.msra.mxu0 %v306
    %700 = vmatpush.msra.mxu0 %v302
    %701 = vmatpush.msra.mxu0 %v298
    %702 = vmatpush.msra.mxu0 %v294
    %703 = vmatpush.msra.mxu0 %v290
    %704 = vmatpush.msra.mxu0 %v286
    %705 = vmatpush.msra.mxu0 %v282
    %706 = vmatpush.msra.mxu0 %v278
    %707 = vmatpush.msra.mxu0 %v274
    %708 = vmatpush.msra.mxu0 %v270
    %709 = vmatpush.msra.mxu0 %v266
    %710 = vmatpush.msra.mxu0 %v262
    %711 = vmatpush.msra.mxu0 %v258
    %712 = vmatpush.msra.mxu0 %v254
    %713 = vmatpush.msra.mxu0 %v250
    %714 = vmatmul.f32.gmra.mxu0 %v240
    %v715 = vpop.f32.mrf.mxu0
    %v716 = vadd.f32 %v508, %v715
    %717 = vmatmul.f32.gmra.mxu0 %v244
    %v718 = vpop.f32.mrf.mxu0
    %v719 = vadd.f32 %v508, %v718
    %720 = vdwg.mxu0
    %721 = vmatpush.msra.mxu0 %v374
    %722 = vmatpush.msra.mxu0 %v370
    %723 = vmatpush.msra.mxu0 %v366
    %724 = vmatpush.msra.mxu0 %v362
    %725 = vmatpush.msra.mxu0 %v358
    %726 = vmatpush.msra.mxu0 %v354
    %727 = vmatpush.msra.mxu0 %v350
    %728 = vmatpush.msra.mxu0 %v346
    %729 = vmatpush.msra.mxu0 %v342
    %730 = vmatpush.msra.mxu0 %v338
    %731 = vmatpush.msra.mxu0 %v334
    %732 = vmatpush.msra.mxu0 %v330
    %733 = vmatpush.msra.mxu0 %v326
    %734 = vmatpush.msra.mxu0 %v322
    %735 = vmatpush.msra.mxu0 %v318
    %736 = vmatpush.msra.mxu0 %v314
    %737 = vmatmul.f32.gmra.mxu0 %v241
    %v738 = vpop.f32.mrf.mxu0
    %v739 = vadd.f32 %v716, %v738
    %740 = vmatmul.f32.gmra.mxu0 %v245
    %v741 = vpop.f32.mrf.mxu0
    %v742 = vadd.f32 %v719, %v741
    %743 = vdwg.mxu0
    %744 = vmatpush.msra.mxu0 %v438
    %745 = vmatpush.msra.mxu0 %v434
    %746 = vmatpush.msra.mxu0 %v430
    %747 = vmatpush.msra.mxu0 %v426
    %748 = vmatpush.msra.mxu0 %v422
    %749 = vmatpush.msra.mxu0 %v418
    %750 = vmatpush.msra.mxu0 %v414
    %751 = vmatpush.msra.mxu0 %v410
    %752 = vmatpush.msra.mxu0 %v406
    %753 = vmatpush.msra.mxu0 %v402
    %754 = vmatpush.msra.mxu0 %v398
    %755 = vmatpush.msra.mxu0 %v394
    %756 = vmatpush.msra.mxu0 %v390
    %757 = vmatpush.msra.mxu0 %v386
    %758 = vmatpush.msra.mxu0 %v382
    %759 = vmatpush.msra.mxu0 %v378
    %760 = vmatmul.f32.gmra.mxu0 %v242
    %v761 = vpop.f32.mrf.mxu0
    %v762 = vadd.f32 %v739, %v761
    %763 = vmatmul.f32.gmra.mxu0 %v246
    %v764 = vpop.f32.mrf.mxu0
    %v765 = vadd.f32 %v742, %v764
    %766 = vdwg.mxu0
    %767 = vmatpush.msra.mxu0 %v502
    %768 = vmatpush.msra.mxu0 %v498
    %769 = vmatpush.msra.mxu0 %v494
    %770 = vmatpush.msra.mxu0 %v490
    %771 = vmatpush.msra.mxu0 %v486
    %772 = vmatpush.msra.mxu0 %v482
    %773 = vmatpush.msra.mxu0 %v478
    %774 = vmatpush.msra.mxu0 %v474
    %775 = vmatpush.msra.mxu0 %v470
    %776 = vmatpush.msra.mxu0 %v466
    %777 = vmatpush.msra.mxu0 %v462
    %778 = vmatpush.msra.mxu0 %v458
    %779 = vmatpush.msra.mxu0 %v454
    %780 = vmatpush.msra.mxu0 %v450
    %781 = vmatpush.msra.mxu0 %v446
    %782 = vmatpush.msra.mxu0 %v442
    %783 = vmatmul.f32.gmra.mxu0 %v243
    %v784 = vpop.f32.mrf.mxu0
    %v785 = vadd.f32 %v762, %v784
    %786 = vmatmul.f32.gmra.mxu0 %v247
    %v787 = vpop.f32.mrf.mxu0
    %v788 = vadd.f32 %v765, %v787
    %789 = vdwg.mxu0
    %790 = vmatpush.msra.mxu0 %v311
    %791 = vmatpush.msra.mxu0 %v307
    %792 = vmatpush.msra.mxu0 %v303
    %793 = vmatpush.msra.mxu0 %v299
    %794 = vmatpush.msra.mxu0 %v295
    %795 = vmatpush.msra.mxu0 %v291
    %796 = vmatpush.msra.mxu0 %v287
    %797 = vmatpush.msra.mxu0 %v283
    %798 = vmatpush.msra.mxu0 %v279
    %799 = vmatpush.msra.mxu0 %v275
    %800 = vmatpush.msra.mxu0 %v271
    %801 = vmatpush.msra.mxu0 %v267
    %802 = vmatpush.msra.mxu0 %v263
    %803 = vmatpush.msra.mxu0 %v259
    %804 = vmatpush.msra.mxu0 %v255
    %805 = vmatpush.msra.mxu0 %v251
    %806 = vmatmul.f32.gmra.mxu0 %v240
    %v807 = vpop.f32.mrf.mxu0
    %v808 = vadd.f32 %v509, %v807
    %809 = vmatmul.f32.gmra.mxu0 %v244
    %v810 = vpop.f32.mrf.mxu0
    %v811 = vadd.f32 %v509, %v810
    %812 = vdwg.mxu0
    %813 = vmatpush.msra.mxu0 %v375
    %814 = vmatpush.msra.mxu0 %v371
    %815 = vmatpush.msra.mxu0 %v367
    %816 = vmatpush.msra.mxu0 %v363
    %817 = vmatpush.msra.mxu0 %v359
    %818 = vmatpush.msra.mxu0 %v355
    %819 = vmatpush.msra.mxu0 %v351
    %820 = vmatpush.msra.mxu0 %v347
    %821 = vmatpush.msra.mxu0 %v343
    %822 = vmatpush.msra.mxu0 %v339
    %823 = vmatpush.msra.mxu0 %v335
    %824 = vmatpush.msra.mxu0 %v331
    %825 = vmatpush.msra.mxu0 %v327
    %826 = vmatpush.msra.mxu0 %v323
    %827 = vmatpush.msra.mxu0 %v319
    %828 = vmatpush.msra.mxu0 %v315
    %829 = vmatmul.f32.gmra.mxu0 %v241
    %v830 = vpop.f32.mrf.mxu0
    %v831 = vadd.f32 %v808, %v830
    %832 = vmatmul.f32.gmra.mxu0 %v245
    %v833 = vpop.f32.mrf.mxu0
    %v834 = vadd.f32 %v811, %v833
    %835 = vdwg.mxu0
    %836 = vmatpush.msra.mxu0 %v439
    %837 = vmatpush.msra.mxu0 %v435
    %838 = vmatpush.msra.mxu0 %v431
    %839 = vmatpush.msra.mxu0 %v427
    %840 = vmatpush.msra.mxu0 %v423
    %841 = vmatpush.msra.mxu0 %v419
    %842 = vmatpush.msra.mxu0 %v415
    %843 = vmatpush.msra.mxu0 %v411
    %844 = vmatpush.msra.mxu0 %v407
    %845 = vmatpush.msra.mxu0 %v403
    %846 = vmatpush.msra.mxu0 %v399
    %847 = vmatpush.msra.mxu0 %v395
    %848 = vmatpush.msra.mxu0 %v391
    %849 = vmatpush.msra.mxu0 %v387
    %850 = vmatpush.msra.mxu0 %v383
    %851 = vmatpush.msra.mxu0 %v379
    %852 = vmatmul.f32.gmra.mxu0 %v242
    %v853 = vpop.f32.mrf.mxu0
    %v854 = vadd.f32 %v831, %v853
    %855 = vmatmul.f32.gmra.mxu0 %v246
    %v856 = vpop.f32.mrf.mxu0
    %v857 = vadd.f32 %v834, %v856
    %858 = vdwg.mxu0
    %859 = vmatpush.msra.mxu0 %v503
    %860 = vmatpush.msra.mxu0 %v499
    %861 = vmatpush.msra.mxu0 %v495
    %862 = vmatpush.msra.mxu0 %v491
    %863 = vmatpush.msra.mxu0 %v487
    %864 = vmatpush.msra.mxu0 %v483
    %865 = vmatpush.msra.mxu0 %v479
    %866 = vmatpush.msra.mxu0 %v475
    %867 = vmatpush.msra.mxu0 %v471
    %868 = vmatpush.msra.mxu0 %v467
    %869 = vmatpush.msra.mxu0 %v463
    %870 = vmatpush.msra.mxu0 %v459
    %871 = vmatpush.msra.mxu0 %v455
    %872 = vmatpush.msra.mxu0 %v451
    %873 = vmatpush.msra.mxu0 %v447
    %874 = vmatpush.msra.mxu0 %v443
    %875 = vmatmul.f32.gmra.mxu0 %v243
    %v876 = vpop.f32.mrf.mxu0
    %v877 = vadd.f32 %v854, %v876
    %878 = vmatmul.f32.gmra.mxu0 %v247
    %v879 = vpop.f32.mrf.mxu0
    %v880 = vadd.f32 %v857, %v879
    %881 = vdwg.mxu0
    %v882 = vld [vmem:[#allocation3] sm:$0xff]
    %v883 = vld [vmem:[#allocation3 + $0x8] sm:$0xff]
    %v884 = vld [vmem:[#allocation3 + $0x10] sm:$0xff]
    %v885 = vld [vmem:[#allocation3 + $0x18] sm:$0xff]
    %v886 = vld [vmem:[#allocation3 + $0x20] sm:$0xff]
    %v887 = vld [vmem:[#allocation3 + $0x28] sm:$0xff]
    %v888 = vld [vmem:[#allocation3 + $0x30] sm:$0xff]
    %v889 = vld [vmem:[#allocation3 + $0x38] sm:$0xff]
    %v890 = vadd.f32 %v882, %v601
    %v891 = vadd.f32 %v883, %v693
    %v892 = vadd.f32 %v884, %v785
    %v893 = vadd.f32 %v885, %v877
    %v894 = vadd.f32 %v886, %v604
    %v895 = vadd.f32 %v887, %v696
    %v896 = vadd.f32 %v888, %v788
    %v897 = vadd.f32 %v889, %v880
    %898 = vst [vmem:[#allocation11] sm:$0xff] %v890
    %899 = vst [vmem:[#allocation11 + $0x8] sm:$0xff] %v891
    %900 = vst [vmem:[#allocation11 + $0x10] sm:$0xff] %v892
    %901 = vst [vmem:[#allocation11 + $0x18] sm:$0xff] %v893
    %902 = vst [vmem:[#allocation11 + $0x20] sm:$0xff] %v894
    %903 = vst [vmem:[#allocation11 + $0x28] sm:$0xff] %v895
    %904 = vst [vmem:[#allocation11 + $0x30] sm:$0xff] %v896
    %905 = vst [vmem:[#allocation11 + $0x38] sm:$0xff] %v897
    // Predicated region
    $region42: #{residual_connection.1} parent=1 // pred_check
      _
    $region43: #{residual_connection.1} parent=1 // pred_check_branch
      %907 = sbr.rel (0) target = $region45
    $region44: #{residual_connection.1} parent=1 // pred_region
      %909 = vsyncadd [#allocation5], 0
      %s910 = sshll.u32 [#allocation11], 4
      %s911 = int_to_ptr.vmem [resolvable:$true] %s910
      %s912 = sshll.u32 %s5, 4
      %s913 = int_to_ptr.hbm [resolvable:$true] %s912
      %918 = dma.vmem_to_hbm [thread:$0]  %s911, 1024, %s913, [#allocation5], 512, 512, 32
    $region45: #{residual_connection.1} parent=1 // pred_fallthru
      _
    // Predicated region
    $region46: #{residual_connection.1} parent=1 // pred_check
      _
    $region47: #{residual_connection.1} parent=1 // pred_check_branch
      %920 = sbr.rel (0) target = $region49
    $region48: #{residual_connection.1} parent=1 // pred_region
      %922 = dma.done [#allocation5], 1024
    $region49: #{residual_connection.1} parent=1 // pred_fallthru
      _
    %923 = vsyncpa [#allocation4], 1
    %924 = vsyncpa [#allocation7], 1
    %925 = vsyncpa [#allocation10], 1
    %926 = vsyncpa [#allocation5], 1

</llo_original>
